<compile_context>
chip_gen: v7x
topology: tpu7x:2x2x1
jax: 0.10.0
libtpu: 0.0.40
codegen_flags: <defaults>
</compile_context>

<pallas_src>
import functools

import numpy as np
import jax
import jax.numpy as jnp
from jax import lax
from jax.experimental import pallas as pl
from jax.experimental.pallas import tpu as pltpu


def _nce_exp_kernel(x_ref, xt_ref, rcls_ref, ccls_ref, e_ref, *, inv_T, inv_spc_m1):
    tm, bs = e_ref.shape
    row0 = pl.program_id(0) * tm

    # Gram tile on the MXU; f32 accumulation regardless of input dtype.
    g = jnp.dot(x_ref[...], xt_ref[...], preferred_element_type=jnp.float32)  # (tm, bs)

    # In-kernel masks (no dense mask inputs, no integer division).
    rows = row0 + lax.broadcasted_iota(jnp.int32, (tm, bs), 0)
    cols = lax.broadcasted_iota(jnp.int32, (tm, bs), 1)
    is_diag = rows == cols
    same_class = rcls_ref[...] == ccls_ref[...]            # (tm,1)==(1,bs) -> (tm,bs)
    pos_mask = jnp.logical_and(same_class, jnp.logical_not(is_diag))

    # Positive logit: mean over the (spc-1) within-class pairs (self excluded).
    pos = jnp.sum(jnp.where(pos_mask, g, 0.0), axis=1, keepdims=True) * inv_spc_m1
    e_pos = jnp.exp(pos * inv_T)                           # (tm, 1), f32 elementwise
    e_all = jnp.exp(g * inv_T)                             # (tm, bs)

    # Single lane-dense store; diagonal carries the positive exp value.
    e_ref[...] = jnp.where(is_diag, e_pos, e_all)


def nce_average_forward(x, neg_indices, *, sample_per_class, T, nLen,
                        matmul_dtype=None, block_rows=256):
    """Pallas-backed NCEAverage.forward (first call, Z < 0).

    Returns (outs[bs, 1+n_neg], probs scalar)."""
    bs, D = x.shape
    spc = int(sample_per_class)
    neg_indices = jnp.asarray(neg_indices, dtype=jnp.int32)

    xin = x.astype(matmul_dtype) if matmul_dtype is not None else x
    xt = xin.T                      # one-time XLA transpose; MXU sees a transpose-free contraction

    class_ids = (np.arange(bs, dtype=np.int32) // spc).astype(np.int32)
    row_class = jnp.asarray(class_ids).reshape(bs, 1)
    col_class = jnp.asarray(class_ids).reshape(1, bs)

    tm = bs if bs <= block_rows else block_rows
    grid = (pl.cdiv(bs, tm),)

    itemsize = jnp.dtype(xin.dtype).itemsize
    vmem_need = 2 * (tm * D * itemsize + D * bs * itemsize + tm * bs * 4) + (2 << 20)
    vmem_limit = int(min(64 << 20, max(vmem_need, 32 << 20)))   # <= v7x physical VMEM

    kernel = functools.partial(
        _nce_exp_kernel,
        inv_T=float(1.0 / T),
        inv_spc_m1=float(1.0 / (spc - 1)),
    )

    e = pl.pallas_call(
        kernel,
        out_shape=jax.ShapeDtypeStruct((bs, bs), jnp.float32),
        grid=grid,
        in_specs=[
            pl.BlockSpec((tm, D), lambda i: (i, 0)),   # x row tile
            pl.BlockSpec((D, bs), lambda i: (0, 0)),   # x^T (full, resident)
            pl.BlockSpec((tm, 1), lambda i: (i, 0)),   # row class ids
            pl.BlockSpec((1, bs), lambda i: (0, 0)),   # col class ids
        ],
        out_specs=pl.BlockSpec((tm, bs), lambda i: (i, 0)),
        compiler_params=pltpu.CompilerParams(
            dimension_semantics=("parallel",),
            vmem_limit_bytes=vmem_limit,
        ),
        cost_estimate=pl.CostEstimate(
            flops=2 * bs * bs * D,
            transcendentals=bs * bs + bs,
            bytes_accessed=bs * D * itemsize + grid[0] * D * bs * itemsize + bs * bs * 4,
        ),
    )(xin, xt, row_class, col_class)

    # Cheap XLA epilogue: ordered negative gather, global Z, normalization, probs.
    e_pos = jnp.diagonal(e)[:, None]                        # (bs, 1)
    e_neg = jnp.take_along_axis(e, neg_indices, axis=1)     # (bs, n_neg), torch ordering
    outs_un = jnp.concatenate([e_pos, e_neg], axis=1)       # (bs, 1 + n_neg)
    Z = outs_un.mean() * nLen                               # first-call Z (params[0] < 0)
    outs = outs_un / Z
    probs = (outs / outs.sum(axis=1, keepdims=True))[:, 0].mean()
    return outs, probs


# ---------------------------------------------------------------------------
# Host-side "prepare_indices" glue (mirrors NCEAverage.prepare_indices).
# ---------------------------------------------------------------------------
def prepare_indices(num_classes, sample_per_class):
    spc = sample_per_class
    bs = num_classes * spc
    groups = [[c * spc + k for k in range(spc)] for c in range(num_classes)]
    pos_indices = np.zeros((bs, spc - 1), np.int32)
    neg_indices = np.zeros((bs, (num_classes - 1) * spc), np.int32)
    for i in range(bs):
        c = i // spc
        pos_indices[i] = [j for j in groups[c] if j != i]
        neg_indices[i] = [j for cc in range(num_classes) if cc != c for j in groups[cc]]
    return pos_indices, neg_indices


# Pure-JAX reference replicating the PyTorch forward (first call, Z < 0 path).
def reference_forward(x, pos_indices, neg_indices, T, nLen):
    pos = jnp.mean(jnp.sum(x[:, None, :] * x[pos_indices], -1), -1, keepdims=True)
    neg = jnp.sum(x[:, None, :] * x[neg_indices], -1)
    logits = jnp.concatenate([pos, neg], axis=1)
    outs = jnp.exp(logits / T)
    Z = outs.mean() * nLen
    outs = outs / Z
    probs = (outs / outs.sum(1, keepdims=True))[:, 0].mean()
    return outs, probs


if __name__ == "__main__":
    # Small shapes consistent with the module:
    #   embed_dim=32, num_classes=4, sample_per_class=2 -> bs=8
    inputSize = 32          # embed_dim
    num_classes = 4         # number of classes in the batch
    sample_per_class = 2
    nLen = 100              # dataset / memory-bank size
    T = 0.07                # temperature
    bs = num_classes * sample_per_class

    key = jax.random.PRNGKey(0)
    x = jax.random.normal(key, (bs, inputSize), dtype=jnp.float32)
    # embeddings are unit vectors in the original pipeline
    x = x / jnp.linalg.norm(x, axis=1, keepdims=True)

    pos_idx_np, neg_idx_np = prepare_indices(num_classes, sample_per_class)
    pos_idx = jnp.asarray(pos_idx_np)
    neg_idx = jnp.asarray(neg_idx_np)

    # TODO(synk): stateful pieces (running Z with Z_momentum, memory-bank scatter
    # updates, index re-preparation when i == nLen - 1) are host-side buffer
    # mutations and are not part of the returned forward tensors; first-call
    # (Z = -1) semantics are implemented here.

    # --- f32 MXU path: strict check against the f32 reference --------------
    outs, probs = nce_average_forward(
        x, neg_idx, sample_per_class=sample_per_class, T=T, nLen=nLen)
    jax.block_until_ready((outs, probs))
    outs_ref, probs_ref = reference_forward(x, pos_idx, neg_idx, T, nLen)
    np.testing.assert_allclose(np.asarray(outs), np.asarray(outs_ref),
                               rtol=1e-4, atol=1e-5)
    np.testing.assert_allclose(float(probs), float(probs_ref),
                               rtol=1e-4, atol=1e-6)

    # --- bf16 MXU path (v6e/v5e fast path), f32 accumulation/elementwise ----
    # Checked against a reference computed from identically bf16-rounded inputs.
    x_bf = x.astype(jnp.bfloat16).astype(jnp.float32)
    outs_b, probs_b = nce_average_forward(
        x, neg_idx, sample_per_class=sample_per_class, T=T, nLen=nLen,
        matmul_dtype=jnp.bfloat16)
    jax.block_until_ready((outs_b, probs_b))
    outs_bref, probs_bref = reference_forward(x_bf, pos_idx, neg_idx, T, nLen)
    np.testing.assert_allclose(np.asarray(outs_b), np.asarray(outs_bref),
                               rtol=5e-3, atol=1e-5)
    np.testing.assert_allclose(float(probs_b), float(probs_bref),
                               rtol=5e-3, atol=1e-6)

    print("KERNEL_OK")
</pallas_src>

<mosaic_0001>
module attributes {stable_mosaic.version = 11 : i64} {
  func.func @_nce_exp_kernel(%arg0: i32, %arg1: memref<8x32xf32, #tpu.memory_space<vmem>>, %arg2: memref<32x8xf32, #tpu.memory_space<vmem>>, %arg3: memref<8x1xi32, #tpu.memory_space<vmem>>, %arg4: memref<1x8xi32, #tpu.memory_space<vmem>>, %arg5: memref<8x8xf32, #tpu.memory_space<vmem>>) attributes {dimension_semantics = [#tpu.dimension_semantics<parallel>], iteration_bounds = array<i64: 1>, scalar_prefetch = 0 : i64, scratch_operands = 0 : i64, tpu.core_type = #tpu.core_type<tc>, window_params = [{transform_indices = @transform_0, window_bounds = array<i64: 8, 32>}, {pipeline_mode = #tpu.pipeline_mode<synchronous>, transform_indices = @transform_1, window_bounds = array<i64: 32, 8>}, {transform_indices = @transform_2, window_bounds = array<i64: 8, 1>}, {pipeline_mode = #tpu.pipeline_mode<synchronous>, transform_indices = @transform_3, window_bounds = array<i64: 1, 8>}, {transform_indices = @transform_4, window_bounds = array<i64: 8, 8>}]} {
    %c8_i32 = arith.constant 8 : i32
    %0 = arith.muli %arg0, %c8_i32 : i32
    %c0 = arith.constant 0 : index
    %c0_0 = arith.constant 0 : index
    %1 = vector.load %arg1[%c0, %c0_0] : memref<8x32xf32, #tpu.memory_space<vmem>>, vector<8x32xf32>
    %c0_1 = arith.constant 0 : index
    %c0_2 = arith.constant 0 : index
    %2 = vector.load %arg2[%c0_1, %c0_2] : memref<32x8xf32, #tpu.memory_space<vmem>>, vector<32x8xf32>
    %cst = arith.constant dense<0.000000e+00> : vector<8x8xf32>
    %3 = tpu.matmul %1, %2, %cst {dimension_numbers = #tpu.dot_dimension_numbers<[1], [0], [0], [1], [0, 0, 1, 1], [], []>} : vector<8x32xf32>, vector<32x8xf32>, vector<8x8xf32> -> vector<8x8xf32>
    %4 = tpu.iota {dimensions = array<i32: 0>} : vector<8x8xi32>
    %5 = vector.broadcast %0 : i32 to vector<8x8xi32>
    %6 = arith.addi %5, %4 : vector<8x8xi32>
    %7 = tpu.iota {dimensions = array<i32: 1>} : vector<8x8xi32>
    %8 = arith.cmpi eq, %6, %7 : vector<8x8xi32>
    %c0_3 = arith.constant 0 : index
    %c0_4 = arith.constant 0 : index
    %9 = vector.load %arg3[%c0_3, %c0_4] : memref<8x1xi32, #tpu.memory_space<vmem>>, vector<8x1xi32>
    %c0_5 = arith.constant 0 : index
    %c0_6 = arith.constant 0 : index
    %10 = vector.load %arg4[%c0_5, %c0_6] : memref<1x8xi32, #tpu.memory_space<vmem>>, vector<1x8xi32>
    %11 = vector.broadcast %9 : vector<8x1xi32> to vector<8x8xi32>
    %12 = vector.broadcast %10 : vector<1x8xi32> to vector<8x8xi32>
    %13 = arith.cmpi eq, %11, %12 : vector<8x8xi32>
    %cst_7 = arith.constant dense<true> : vector<8x8xi1>
    %14 = arith.xori %8, %cst_7 : vector<8x8xi1>
    %15 = arith.andi %13, %14 : vector<8x8xi1>
    %cst_8 = arith.constant 0.000000e+00 : f32
    %16 = vector.broadcast %cst_8 : f32 to vector<8x8xf32>
    %17 = arith.select %15, %3, %16 : vector<8x8xi1>, vector<8x8xf32>
    %cst_9 = arith.constant dense<0.000000e+00> : vector<8xf32>
    %18 = vector.multi_reduction <add>, %17, %cst_9 [1] : vector<8x8xf32> to vector<8xf32>
    %19 = vector.shape_cast %18 : vector<8xf32> to vector<8x1xf32>
    %cst_10 = arith.constant 1.000000e+00 : f32
    %20 = vector.broadcast %cst_10 : f32 to vector<8x1xf32>
    %21 = arith.mulf %19, %20 : vector<8x1xf32>
    %cst_11 = arith.constant 14.2857141 : f32
    %22 = vector.broadcast %cst_11 : f32 to vector<8x1xf32>
    %23 = arith.mulf %21, %22 : vector<8x1xf32>
    %24 = math.exp %23 : vector<8x1xf32>
    %cst_12 = arith.constant 14.2857141 : f32
    %25 = vector.broadcast %cst_12 : f32 to vector<8x8xf32>
    %26 = arith.mulf %3, %25 : vector<8x8xf32>
    %27 = math.exp %26 : vector<8x8xf32>
    %28 = vector.shape_cast %24 : vector<8x1xf32> to vector<8x1xf32>
    %29 = vector.broadcast %28 : vector<8x1xf32> to vector<8x8xf32>
    %30 = arith.select %8, %29, %27 : vector<8x8xi1>, vector<8x8xf32>
    %c0_13 = arith.constant 0 : index
    %c0_14 = arith.constant 0 : index
    %31 = vector.load %arg5[%c0_13, %c0_14] : memref<8x8xf32, #tpu.memory_space<vmem>>, vector<8x8xf32>
    tpu.vector_store %arg5[%c0_13, %c0_14], %30 {strides = array<i32>} : memref<8x8xf32, #tpu.memory_space<vmem>>, vector<8x8xf32>,
    return
  }
  func.func @transform_0(%arg0: i32) -> (i32, i32) {
    %c0_i32 = arith.constant 0 : i32
    %c0_i32_0 = arith.constant 0 : i32
    return %arg0, %c0_i32 : i32, i32
  }
  func.func @transform_1(%arg0: i32) -> (i32, i32) {
    %c0_i32 = arith.constant 0 : i32
    %c0_i32_0 = arith.constant 0 : i32
    %c0_i32_1 = arith.constant 0 : i32
    return %c0_i32, %c0_i32_0 : i32, i32
  }
  func.func @transform_2(%arg0: i32) -> (i32, i32) {
    %c0_i32 = arith.constant 0 : i32
    %c0_i32_0 = arith.constant 0 : i32
    return %arg0, %c0_i32 : i32, i32
  }
  func.func @transform_3(%arg0: i32) -> (i32, i32) {
    %c0_i32 = arith.constant 0 : i32
    %c0_i32_0 = arith.constant 0 : i32
    %c0_i32_1 = arith.constant 0 : i32
    return %c0_i32, %c0_i32_0 : i32, i32
  }
  func.func @transform_4(%arg0: i32) -> (i32, i32) {
    %c0_i32 = arith.constant 0 : i32
    %c0_i32_0 = arith.constant 0 : i32
    return %arg0, %c0_i32 : i32, i32
  }
}

</mosaic_0001>

<llo_original>
// kernel: tpu_custom_call.1
$region0: #{tpu_custom_call.1}
  #allocation0 [shape = 'u32[]', space=smem, size = 0x4, offset = 0x4, fixed_abs, tag = 'smem constant byte address 0x4 - core index']
  #allocation1 [shape = 'u32[144,128]{1,0:T(1,128)}', space=vmem, size = 0x12000, scoped, tag = 'internal scratch']
  %s0 = inlined_call_operand.vmem [shape: f32[8,32], index: 0, kind: input, shape index: {}]
  %s1 = inlined_call_operand.vmem [shape: f32[32,8], index: 1, kind: input, shape index: {}]
  %s2 = inlined_call_operand.vmem [shape: s32[8,1], index: 2, kind: input, shape index: {}]
  %s3 = inlined_call_operand.vmem [shape: s32[1,8], index: 3, kind: input, shape index: {}]
  %s4 = inlined_call_operand.hbm [shape: f32[8,8], index: 4, kind: output, shape index: {}]
  %s5 = sld [smem:[#allocation0]]
  $region26: #{tpu_custom_call.1} parent=0
    _
  %s7 = ssub.s32 1, %s5
  %s8 = scalar_select 0, %s7, %s5
  $region1: #{tpu_custom_call.1} parent=0
    #allocation2 [shape = 'u8[4096]{0}', space=vmem, size = 0x1000, scoped, tag = 'output window, operand 0, single buffered']
    #allocation3 [shape = 's32[1]{0}', space=sflag, size = 0x4, scoped, tag = 'scoped memory for tpu_custom_call.1']
    %9 = vsyncpa [#allocation3], 0
    // Predicated region
    $region2: #{tpu_custom_call.1} parent=1 // pred_check
      _
    $region3: #{tpu_custom_call.1} parent=1 // pred_check_branch
      %11 = sbr.rel (0) target = $region5
    $region4: #{tpu_custom_call.1} parent=1 // pred_region
      _
    $region5: #{tpu_custom_call.1} parent=1 // pred_fallthru
      _
    // Predicated region
    $region6: #{tpu_custom_call.1} parent=1 // pred_check
      _
    $region7: #{tpu_custom_call.1} parent=1 // pred_check_branch
      %13 = sbr.rel (0) target = $region9
    $region8: #{tpu_custom_call.1} parent=1 // pred_region
      _
    $region9: #{tpu_custom_call.1} parent=1 // pred_fallthru
      _
    // Predicated region
    $region10: #{tpu_custom_call.1} parent=1 // pred_check
      _
    $region11: #{tpu_custom_call.1} parent=1 // pred_check_branch
      %15 = sbr.rel (0) target = $region13
    $region12: #{tpu_custom_call.1} parent=1 // pred_region
      _
    $region13: #{tpu_custom_call.1} parent=1 // pred_fallthru
      _
    // Predicated region
    $region14: #{tpu_custom_call.1} parent=1 // pred_check
      _
    $region15: #{tpu_custom_call.1} parent=1 // pred_check_branch
      %17 = sbr.rel (0) target = $region17
    $region16: #{tpu_custom_call.1} parent=1 // pred_region
      _
    $region17: #{tpu_custom_call.1} parent=1 // pred_fallthru
      _
    %s18 = smul.u32 0, 8
    %v19 = vld [vmem:[%s0] sm:$0xff]
    %v20 = vld [vmem:[%s1] sm:$0xff]
    %v21 = vld [vmem:[%s1 + $0x8] sm:$0xff]
    %v22 = vld [vmem:[%s1 + $0x10] sm:$0xff]
    %v23 = vld [vmem:[%s1 + $0x18] sm:$0xff]
    %vm24 = vcmask 261120
    %v26 = vsel %vm24, %v19, 0
    %28 = vmatprep.subr.mxu0 0.0
    %29 = vmatpush1.msra.mxu0 %v20
    %30 = vmatprep.subr.mxu0 0.0
    %31 = vmatpush1.msra.mxu0 %v21
    %32 = vmatprep.subr.mxu0 0.0
    %33 = vmatpush1.msra.mxu0 %v22
    %34 = vmatprep.subr.mxu0 0.0
    %35 = vmatpush1.msra.mxu0 %v23
    %36 = vmatprep.subr.mxu0 0.0
    %37 = vmatpush1.msra.mxu0 0.0
    %38 = vmatprep.subr.mxu0 0.0
    %39 = vmatpush1.msra.mxu0 0.0
    %40 = vmatprep.subr.mxu0 0.0
    %41 = vmatpush1.msra.mxu0 0.0
    %42 = vmatprep.subr.mxu0 0.0
    %43 = vmatpush1.msra.mxu0 0.0
    %44 = vmatprep.subr.mxu0 0.0
    %45 = vmatpush1.msra.mxu0 0.0
    %46 = vmatprep.subr.mxu0 0.0
    %47 = vmatpush1.msra.mxu0 0.0
    %48 = vmatprep.subr.mxu0 0.0
    %49 = vmatpush1.msra.mxu0 0.0
    %50 = vmatprep.subr.mxu0 0.0
    %51 = vmatpush1.msra.mxu0 0.0
    %52 = vmatprep.subr.mxu0 0.0
    %53 = vmatpush1.msra.mxu0 0.0
    %54 = vmatprep.subr.mxu0 0.0
    %55 = vmatpush1.msra.mxu0 0.0
    %56 = vmatprep.subr.mxu0 0.0
    %57 = vmatpush1.msra.mxu0 0.0
    %58 = vmatprep.subr.mxu0 0.0
    %59 = vmatpush1.msra.mxu0 0.0
    %60 = vmatprep.subr.mxu0 0.0
    %61 = vmatpush1.msra.mxu0 0.0
    %62 = vmatprep.subr.mxu0 0.0
    %63 = vmatpush1.msra.mxu0 0.0
    %64 = vmatprep.subr.mxu0 0.0
    %65 = vmatpush1.msra.mxu0 0.0
    %66 = vmatprep.subr.mxu0 0.0
    %67 = vmatpush1.msra.mxu0 0.0
    %68 = vmatprep.subr.mxu0 0.0
    %69 = vmatpush1.msra.mxu0 0.0
    %70 = vmatprep.subr.mxu0 0.0
    %71 = vmatpush1.msra.mxu0 0.0
    %72 = vmatprep.subr.mxu0 0.0
    %73 = vmatpush1.msra.mxu0 0.0
    %74 = vmatprep.subr.mxu0 0.0
    %75 = vmatpush1.msra.mxu0 0.0
    %76 = vmatprep.subr.mxu0 0.0
    %77 = vmatpush1.msra.mxu0 0.0
    %78 = vmatprep.subr.mxu0 0.0
    %79 = vmatpush1.msra.mxu0 0.0
    %80 = vmatprep.subr.mxu0 0.0
    %81 = vmatpush1.msra.mxu0 0.0
    %82 = vmatprep.subr.mxu0 0.0
    %83 = vmatpush1.msra.mxu0 0.0
    %84 = vmatprep.subr.mxu0 0.0
    %85 = vmatpush1.msra.mxu0 0.0
    %86 = vmatprep.subr.mxu0 0.0
    %87 = vmatpush1.msra.mxu0 0.0
    %88 = vmatprep.subr.mxu0 0.0
    %89 = vmatpush1.msra.mxu0 0.0
    %90 = vmatprep.subr.mxu0 0.0
    %91 = vmatpush1.msra.mxu0 0.0
    %92 = vmatprep.mubr.f32.mxu0 0.0
    %93 = vmatmul.mubr.f32.gmra.mrb[0].mxu0 %v26
    %v94 = vpop.f32.mrb[0].mxu0
    %v95 = vadd.f32 0.0, %v94
    %v96 = vpop.f32.mrb[0].mxu0
    %97 = vdwg.mxu0
    %v98 = vlaneseq
    %v99 = vshrl.u32 %v98, 7
    %v100 = vstv %s18
    %v101 = vadd.s32 %v100, %v99
    %v102 = vlaneseq
    %v103 = vand.u32 %v102, 127
    %vm104 = vcmp.eq.s32.totalorder %v101, %v103
    %v105 = vld [vmem:[%s2] sm:$0xff]
    %v106 = vld [vmem:[%s3] sm:$0x1]
    %107 = vset.pattern.permute.xlu0 0
    %108 = vperm.xlu0 %107, %v105
    %v109 = vpop.permute.xlu0 %108
    %v110 = vlaneseq
    %v111 = vshrl.u32 %v110, 7
    %v112 = vsub.s32 0, %v111
    %v113 = vrot.slane %v106, %v112
    %vm114 = vcmp.eq.s32.totalorder %v109, %v113
    %vm115 = vmxor %vm104, 1
    %vm116 = vmand %vm114, %vm115
    %v117 = vsel %vm116, %v95, 0.0
    %vm118 = vcmask 64512
    %v119 = vsel %vm118, %v117, 0.0
    %120 = vadd.xlane.f32.xlu0 %v119
    %v121 = vpop.xlane.xlu0 %120
    %v122 = vmul.f32 %v121, 14.285714
    %v123 = vmul.f32 %v122, 1.442695
    %v124 = vpow.pop %v123
    %v125 = vmul.f32 %v95, 14.285714
    %v126 = vmul.f32 %v125, 1.442695
    %v127 = vpow.pop %v126
    %v128 = vsel %vm104, %v124, %v127
    %129 = vst.msk [vmem:[#allocation2] sm:$0xff] %vm118, %v128
    // Predicated region
    $region18: #{tpu_custom_call.1} parent=1 // pred_check
      _
    $region19: #{tpu_custom_call.1} parent=1 // pred_check_branch
      %131 = sbr.rel (0) target = $region21
    $region20: #{tpu_custom_call.1} parent=1 // pred_region
      %s133 = ssub.s32 128, 128
      %134 = vsyncadd [#allocation3], %s133
      %s136 = sshll.u32 [#allocation2], 4
      %s137 = int_to_ptr.vmem [resolvable:$true] %s136
      %139 = dma.vmem_to_hbm [thread:$0]  %s137, 128, %s4, [#allocation3]
    $region21: #{tpu_custom_call.1} parent=1 // pred_fallthru
      _
    // Predicated region
    $region22: #{tpu_custom_call.1} parent=1 // pred_check
      _
    $region23: #{tpu_custom_call.1} parent=1 // pred_check_branch
      %141 = sbr.rel (0) target = $region25
    $region24: #{tpu_custom_call.1} parent=1 // pred_region
      %142 = dma.done [#allocation3], 128
    $region25: #{tpu_custom_call.1} parent=1 // pred_fallthru
      _
    %143 = vsyncpa [#allocation3], 1

</llo_original>
